<compile_context>
chip_gen: v6e
topology: v6e:2x2x1
jax: 0.10.0
libtpu: 0.0.40
codegen_flags: <defaults>
</compile_context>

<pallas_src>
import functools

import jax
import jax.numpy as jnp
import numpy as np
from jax.experimental import pallas as pl
from jax.experimental.pallas import tpu as pltpu

EPS_IN = 1e-3  # InstanceNorm2d eps (as in the module)


def _oafilter_kernel(x_ref,
                     w1_ref, b1_ref, a1_ref, c1_ref,
                     w2t_ref, b2_ref, a2_ref, c2_ref,
                     a3_ref, c3_ref,
                     w3_ref, b3_ref,
                     *rest, bb, fuse_shortcut):
    if fuse_shortcut:
        ws_ref, out_ref = rest
    else:
        (out_ref,) = rest

    x = x_ref[...]                                      # (bb, C, P) f32
    O = w1_ref.shape[0]

    # ---- conv1: InstanceNorm(C) -> BN(C) -> ReLU (batched over bb) ------------------
    # Two-pass IN variance (biased, matches PyTorch InstanceNorm2d in eval).
    mu = jnp.mean(x, axis=2, keepdims=True)
    d = x - mu
    var = jnp.mean(d * d, axis=2, keepdims=True)
    y = d * jax.lax.rsqrt(var + EPS_IN)
    y = jnp.maximum(y * a1_ref[...] + c1_ref[...], 0.0).astype(jnp.bfloat16)  # (bb,C,P)

    # 1x1 conv (C->O) per batch slice; PyTorch's trans(1,2) is absorbed by keeping the
    # (O, P) layout — no in-kernel transpose.
    t_slices = [
        jnp.dot(w1_ref[...], y[i], preferred_element_type=jnp.float32) + b1_ref[...]
        for i in range(bb)
    ]
    t = jnp.concatenate(t_slices, axis=0) if bb > 1 else t_slices[0]   # (bb*O, P)

    # ---- conv2 (acts on points axis): BN(P) -> ReLU -> 1x1 conv (P->P), residual ----
    # Dominant matmul: (bb*O, P) @ (P, P) — batch-blocked to fill the MXU.
    z = jnp.maximum(t * a2_ref[...] + c2_ref[...], 0.0)        # (bb*O, P); (1,P) bcast
    z = jnp.dot(z.astype(jnp.bfloat16), w2t_ref[...],          # contract over P via w2^T
                preferred_element_type=jnp.float32) + b2_ref[...]
    t = t + z                                                  # out = out + conv2(out)

    # ---- conv3 per slice: InstanceNorm(O) -> BN(O) -> ReLU -> 1x1 conv (O->O) -------
    for i in range(bb):
        ti = t[i * O:(i + 1) * O, :] if bb > 1 else t          # (O, P), static slice
        mu3 = jnp.mean(ti, axis=1, keepdims=True)
        d3 = ti - mu3
        var3 = jnp.mean(d3 * d3, axis=1, keepdims=True)
        u = d3 * jax.lax.rsqrt(var3 + EPS_IN)
        u = jnp.maximum(u * a3_ref[...] + c3_ref[...], 0.0).astype(jnp.bfloat16)

        out = jnp.dot(w3_ref[...], u, preferred_element_type=jnp.float32) + b3_ref[...]
        if fuse_shortcut:
            # Shortcut 1x1 conv as a second accumulating MXU dot (no staging buffer);
            # b3_ref already holds b3 + bs (folded on the host).
            out = out + jnp.dot(ws_ref[...], x[i].astype(jnp.bfloat16),
                                preferred_element_type=jnp.float32)
        else:
            out = out + x[i]                                   # identity shortcut
        out_ref[i] = out


def oafilter_pallas(x, prep, *, batch_block=2):
    """x: (B, C, P) float32. prep: dict from prepare_params() (one-time folded)."""
    B, C, P = x.shape
    O = prep["w1"].shape[0]
    fuse = prep["ws"] is not None      # O != C -> 1x1 shortcut conv exists

    bb = batch_block if (B % batch_block == 0) else 1
    grid = (B // bb,)

    weight_args = [prep["w1"], prep["b1"], prep["a1"], prep["c1"],
                   prep["w2t"], prep["b2"], prep["a2"], prep["c2"],
                   prep["a3"], prep["c3"],
                   prep["w3"], prep["b3"]]
    if fuse:
        weight_args.append(prep["ws"])

    # Weights / folded-BN params: whole-array, single-buffered VMEM residents
    # (constant across the batch grid); only x / out are pipelined.
    resident = pl.BlockSpec(memory_space=pltpu.MemorySpace.VMEM)
    in_specs = ([pl.BlockSpec((bb, C, P), lambda b: (b, 0, 0))]
                + [resident] * len(weight_args))
    out_spec = pl.BlockSpec((bb, O, P), lambda b: (b, 0, 0))

    # Explicit VMEM budget: residents + double-buffered x/out blocks + f32 temporaries.
    resident_bytes = sum(int(np.prod(w.shape)) * w.dtype.itemsize for w in weight_args)
    pipeline_bytes = 2 * (bb * C * P * 4 + bb * O * P * 4)
    temp_bytes = 8 * bb * max(O, C) * P * 4
    vmem_limit = min(int(1.25 * (resident_bytes + pipeline_bytes + temp_bytes)) + (4 << 20),
                     100 << 20)

    kernel = functools.partial(_oafilter_kernel, bb=bb, fuse_shortcut=fuse)

    return pl.pallas_call(
        kernel,
        out_shape=jax.ShapeDtypeStruct((B, O, P), jnp.float32),
        grid=grid,
        in_specs=in_specs,
        out_specs=out_spec,
        compiler_params=pltpu.CompilerParams(
            dimension_semantics=("parallel",),
            vmem_limit_bytes=vmem_limit),
    )(x, *weight_args)


# --------------------------- parameter construction ---------------------------

def fold_bn(gamma, beta, mean, var, eps=1e-5):
    """Eval-mode BatchNorm -> per-channel (scale, shift) column vectors."""
    a = gamma * jax.lax.rsqrt(var + eps)
    c = beta - mean * a
    return a[:, None].astype(jnp.float32), c[:, None].astype(jnp.float32)


def make_params(key, channels, points, out_channels):
    ks = jax.random.split(key, 20)
    it = iter(ks)
    nxt = lambda: next(it)

    def bn(n):
        g = jax.random.uniform(nxt(), (n,), minval=0.5, maxval=1.5)
        b = 0.1 * jax.random.normal(nxt(), (n,))
        m = 0.1 * jax.random.normal(nxt(), (n,))
        v = jax.random.uniform(nxt(), (n,), minval=0.5, maxval=1.5)
        return fold_bn(g, b, m, v)

    a1, c1 = bn(channels)
    a2, c2 = bn(points)
    a3, c3 = bn(out_channels)

    w1 = 0.1 * jax.random.normal(nxt(), (out_channels, channels), jnp.float32)
    b1 = 0.05 * jax.random.normal(nxt(), (out_channels, 1), jnp.float32)
    w2 = 0.1 * jax.random.normal(nxt(), (points, points), jnp.float32)
    b2 = 0.05 * jax.random.normal(nxt(), (points, 1), jnp.float32)
    w3 = 0.1 * jax.random.normal(nxt(), (out_channels, out_channels), jnp.float32)
    b3 = 0.05 * jax.random.normal(nxt(), (out_channels, 1), jnp.float32)

    if out_channels != channels:
        ws = 0.1 * jax.random.normal(nxt(), (out_channels, channels), jnp.float32)
        bs = 0.05 * jax.random.normal(nxt(), (out_channels, 1), jnp.float32)
    else:
        ws = None   # PyTorch adds x directly when out_channels == channels.
        bs = None

    return dict(w1=w1, b1=b1, a1=a1, c1=c1,
                w2=w2, b2=b2, a2=a2, c2=c2,
                w3=w3, b3=b3, a3=a3, c3=c3,
                ws=ws, bs=bs)


def prepare_params(p):
    """One-time kernel-ready fold (hoisted out of the forward path): w2 transpose,
    bf16 weight casts, b3+bs fold, lane-dense (1, P) rows for the per-point params."""
    P = p["w2"].shape[0]
    prep = dict(
        w1=p["w1"].astype(jnp.bfloat16),                       # (O, C)
        b1=p["b1"].astype(jnp.float32),                        # (O, 1)
        a1=p["a1"].astype(jnp.float32),                        # (C, 1)
        c1=p["c1"].astype(jnp.float32),
        w2t=jnp.transpose(p["w2"]).astype(jnp.bfloat16),       # (P, P) host-side T
        b2=p["b2"].reshape(1, P).astype(jnp.float32),          # lane-dense rows
        a2=p["a2"].reshape(1, P).astype(jnp.float32),
        c2=p["c2"].reshape(1, P).astype(jnp.float32),
        a3=p["a3"].astype(jnp.float32),                        # (O, 1)
        c3=p["c3"].astype(jnp.float32),
        w3=p["w3"].astype(jnp.bfloat16),                       # (O, O)
    )
    if p["ws"] is not None:
        prep["ws"] = p["ws"].astype(jnp.bfloat16)              # (O, C)
        prep["b3"] = (p["b3"] + p["bs"]).astype(jnp.float32)   # b3 + bs folded
    else:
        prep["ws"] = None
        prep["b3"] = p["b3"].astype(jnp.float32)
    return prep


# --------------------------- pure-JAX reference (for checking) ----------------

def oafilter_ref(x, p):
    def inorm(z):  # z: (B, C, P) -> normalize over P per (b, c)
        mu = jnp.mean(z, axis=2, keepdims=True)
        var = jnp.mean(jnp.square(z - mu), axis=2, keepdims=True)
        return (z - mu) * jax.lax.rsqrt(var + EPS_IN)

    y = inorm(x)
    y = jnp.maximum(y * p["a1"][None] + p["c1"][None], 0.0)
    t = jnp.einsum("oc,bcp->bop", p["w1"], y) + p["b1"][None]      # (B, O, P)
    t = jnp.swapaxes(t, 1, 2)                                      # (B, P, O)

    z = jnp.maximum(t * p["a2"][None] + p["c2"][None], 0.0)
    z = jnp.einsum("qp,bpo->bqo", p["w2"], z) + p["b2"][None]
    t = t + z

    u = jnp.swapaxes(t, 1, 2)                                      # (B, O, P)
    u = inorm(u)
    u = jnp.maximum(u * p["a3"][None] + p["c3"][None], 0.0)
    u = jnp.einsum("qo,bop->bqp", p["w3"], u) + p["b3"][None]

    if p["ws"] is not None:
        sc = jnp.einsum("oc,bcp->bop", p["ws"], x) + p["bs"][None]
    else:
        sc = x
    return u + sc


if __name__ == "__main__":
    key = jax.random.PRNGKey(0)
    # Case 1: O != C -> shortcut conv (second accumulating dot).
    # Case 2: O == C -> identity shortcut, matmul skipped (static branch).
    for B, C, P, O in [(2, 8, 16, 16), (2, 16, 16, 16)]:
        key, kx, kp = jax.random.split(key, 3)
        x = jax.random.normal(kx, (B, C, P), jnp.float32)
        raw = make_params(kp, C, P, O)
        prep = prepare_params(raw)          # one-time fold, not per forward

        out = jax.block_until_ready(oafilter_pallas(x, prep))
        ref = jax.block_until_ready(oafilter_ref(x, raw))
        # bf16 matmul operands (f32 accumulation) -> loosened tolerance vs f32 ref.
        np.testing.assert_allclose(np.asarray(out), np.asarray(ref),
                                   rtol=2e-2, atol=2e-2)

    print("KERNEL_OK")
</pallas_src>

<mosaic_0001>
module attributes {stable_mosaic.version = 11 : i64} {
  func.func @_oafilter_kernel(%arg0: i32, %arg1: memref<2x8x16xf32, #tpu.memory_space<vmem>>, %arg2: memref<16x8xbf16, #tpu.memory_space<vmem>>, %arg3: memref<16x1xf32, #tpu.memory_space<vmem>>, %arg4: memref<8x1xf32, #tpu.memory_space<vmem>>, %arg5: memref<8x1xf32, #tpu.memory_space<vmem>>, %arg6: memref<16x16xbf16, #tpu.memory_space<vmem>>, %arg7: memref<1x16xf32, #tpu.memory_space<vmem>>, %arg8: memref<1x16xf32, #tpu.memory_space<vmem>>, %arg9: memref<1x16xf32, #tpu.memory_space<vmem>>, %arg10: memref<16x1xf32, #tpu.memory_space<vmem>>, %arg11: memref<16x1xf32, #tpu.memory_space<vmem>>, %arg12: memref<16x16xbf16, #tpu.memory_space<vmem>>, %arg13: memref<16x1xf32, #tpu.memory_space<vmem>>, %arg14: memref<16x8xbf16, #tpu.memory_space<vmem>>, %arg15: memref<2x16x16xf32, #tpu.memory_space<vmem>>) attributes {dimension_semantics = [#tpu.dimension_semantics<parallel>], iteration_bounds = array<i64: 1>, scalar_prefetch = 0 : i64, scratch_operands = 0 : i64, tpu.core_type = #tpu.core_type<tc>, window_params = [{transform_indices = @transform_0, window_bounds = array<i64: 2, 8, 16>}, {pipeline_mode = #tpu.pipeline_mode<synchronous>, transform_indices = @transform_1, window_bounds = array<i64: 16, 8>}, {pipeline_mode = #tpu.pipeline_mode<synchronous>, transform_indices = @transform_2, window_bounds = array<i64: 16, 1>}, {pipeline_mode = #tpu.pipeline_mode<synchronous>, transform_indices = @transform_3, window_bounds = array<i64: 8, 1>}, {pipeline_mode = #tpu.pipeline_mode<synchronous>, transform_indices = @transform_4, window_bounds = array<i64: 8, 1>}, {pipeline_mode = #tpu.pipeline_mode<synchronous>, transform_indices = @transform_5, window_bounds = array<i64: 16, 16>}, {pipeline_mode = #tpu.pipeline_mode<synchronous>, transform_indices = @transform_6, window_bounds = array<i64: 1, 16>}, {pipeline_mode = #tpu.pipeline_mode<synchronous>, transform_indices = @transform_7, window_bounds = array<i64: 1, 16>}, {pipeline_mode = #tpu.pipeline_mode<synchronous>, transform_indices = @transform_8, window_bounds = array<i64: 1, 16>}, {pipeline_mode = #tpu.pipeline_mode<synchronous>, transform_indices = @transform_9, window_bounds = array<i64: 16, 1>}, {pipeline_mode = #tpu.pipeline_mode<synchronous>, transform_indices = @transform_10, window_bounds = array<i64: 16, 1>}, {pipeline_mode = #tpu.pipeline_mode<synchronous>, transform_indices = @transform_11, window_bounds = array<i64: 16, 16>}, {pipeline_mode = #tpu.pipeline_mode<synchronous>, transform_indices = @transform_12, window_bounds = array<i64: 16, 1>}, {pipeline_mode = #tpu.pipeline_mode<synchronous>, transform_indices = @transform_13, window_bounds = array<i64: 16, 8>}, {transform_indices = @transform_14, window_bounds = array<i64: 2, 16, 16>}]} {
    %c0 = arith.constant 0 : index
    %c0_0 = arith.constant 0 : index
    %c0_1 = arith.constant 0 : index
    %0 = vector.load %arg1[%c0, %c0_0, %c0_1] : memref<2x8x16xf32, #tpu.memory_space<vmem>>, vector<2x8x16xf32>
    %cst = arith.constant dense<0.000000e+00> : vector<2x8xf32>
    %1 = vector.multi_reduction <add>, %0, %cst [2] : vector<2x8x16xf32> to vector<2x8xf32>
    %2 = vector.shape_cast %1 : vector<2x8xf32> to vector<2x8x1xf32>
    %cst_2 = arith.constant 1.600000e+01 : f32
    %3 = vector.broadcast %cst_2 : f32 to vector<2x8x1xf32>
    %4 = arith.divf %2, %3 : vector<2x8x1xf32>
    %5 = vector.broadcast %4 : vector<2x8x1xf32> to vector<2x8x16xf32>
    %6 = arith.subf %0, %5 : vector<2x8x16xf32>
    %7 = arith.mulf %6, %6 : vector<2x8x16xf32>
    %cst_3 = arith.constant dense<0.000000e+00> : vector<2x8xf32>
    %8 = vector.multi_reduction <add>, %7, %cst_3 [2] : vector<2x8x16xf32> to vector<2x8xf32>
    %9 = vector.shape_cast %8 : vector<2x8xf32> to vector<2x8x1xf32>
    %cst_4 = arith.constant 1.600000e+01 : f32
    %10 = vector.broadcast %cst_4 : f32 to vector<2x8x1xf32>
    %11 = arith.divf %9, %10 : vector<2x8x1xf32>
    %cst_5 = arith.constant 1.000000e-03 : f32
    %12 = vector.broadcast %cst_5 : f32 to vector<2x8x1xf32>
    %13 = arith.addf %11, %12 : vector<2x8x1xf32>
    %14 = math.rsqrt %13 : vector<2x8x1xf32>
    %15 = vector.broadcast %14 : vector<2x8x1xf32> to vector<2x8x16xf32>
    %16 = arith.mulf %6, %15 : vector<2x8x16xf32>
    %c0_6 = arith.constant 0 : index
    %c0_7 = arith.constant 0 : index
    %17 = vector.load %arg4[%c0_6, %c0_7] : memref<8x1xf32, #tpu.memory_space<vmem>>, vector<8x1xf32>
    %18 = vector.shape_cast %17 : vector<8x1xf32> to vector<1x8x1xf32>
    %19 = vector.broadcast %18 : vector<1x8x1xf32> to vector<2x8x16xf32>
    %20 = arith.mulf %16, %19 : vector<2x8x16xf32>
    %c0_8 = arith.constant 0 : index
    %c0_9 = arith.constant 0 : index
    %21 = vector.load %arg5[%c0_8, %c0_9] : memref<8x1xf32, #tpu.memory_space<vmem>>, vector<8x1xf32>
    %22 = vector.shape_cast %21 : vector<8x1xf32> to vector<1x8x1xf32>
    %23 = vector.broadcast %22 : vector<1x8x1xf32> to vector<2x8x16xf32>
    %24 = arith.addf %20, %23 : vector<2x8x16xf32>
    %cst_10 = arith.constant 0.000000e+00 : f32
    %25 = vector.broadcast %cst_10 : f32 to vector<2x8x16xf32>
    %26 = arith.maximumf %24, %25 : vector<2x8x16xf32>
    %27 = arith.truncf %26 : vector<2x8x16xf32> to vector<2x8x16xbf16>
    %c0_11 = arith.constant 0 : index
    %c0_12 = arith.constant 0 : index
    %28 = vector.load %arg2[%c0_11, %c0_12] : memref<16x8xbf16, #tpu.memory_space<vmem>>, vector<16x8xbf16>
    %29 = vector.extract_strided_slice %27 {offsets = [0, 0, 0], sizes = [1, 8, 16], strides = [1, 1, 1]} : vector<2x8x16xbf16> to vector<1x8x16xbf16>
    %30 = vector.shape_cast %29 : vector<1x8x16xbf16> to vector<8x16xbf16>
    %cst_13 = arith.constant dense<0.000000e+00> : vector<16x16xf32>
    %31 = tpu.matmul %28, %30, %cst_13 {dimension_numbers = #tpu.dot_dimension_numbers<[1], [0], [0], [1], [0, 0, 1, 1], [], []>} : vector<16x8xbf16>, vector<8x16xbf16>, vector<16x16xf32> -> vector<16x16xf32>
    %c0_14 = arith.constant 0 : index
    %c0_15 = arith.constant 0 : index
    %32 = vector.load %arg3[%c0_14, %c0_15] : memref<16x1xf32, #tpu.memory_space<vmem>>, vector<16x1xf32>
    %33 = vector.broadcast %32 : vector<16x1xf32> to vector<16x16xf32>
    %34 = arith.addf %31, %33 : vector<16x16xf32>
    %c0_16 = arith.constant 0 : index
    %c0_17 = arith.constant 0 : index
    %35 = vector.load %arg2[%c0_16, %c0_17] : memref<16x8xbf16, #tpu.memory_space<vmem>>, vector<16x8xbf16>
    %36 = vector.extract_strided_slice %27 {offsets = [1, 0, 0], sizes = [1, 8, 16], strides = [1, 1, 1]} : vector<2x8x16xbf16> to vector<1x8x16xbf16>
    %37 = vector.shape_cast %36 : vector<1x8x16xbf16> to vector<8x16xbf16>
    %cst_18 = arith.constant dense<0.000000e+00> : vector<16x16xf32>
    %38 = tpu.matmul %35, %37, %cst_18 {dimension_numbers = #tpu.dot_dimension_numbers<[1], [0], [0], [1], [0, 0, 1, 1], [], []>} : vector<16x8xbf16>, vector<8x16xbf16>, vector<16x16xf32> -> vector<16x16xf32>
    %c0_19 = arith.constant 0 : index
    %c0_20 = arith.constant 0 : index
    %39 = vector.load %arg3[%c0_19, %c0_20] : memref<16x1xf32, #tpu.memory_space<vmem>>, vector<16x1xf32>
    %40 = vector.broadcast %39 : vector<16x1xf32> to vector<16x16xf32>
    %41 = arith.addf %38, %40 : vector<16x16xf32>
    %42 = tpu.concatenate %34, %41 in 0 : vector<16x16xf32>, vector<16x16xf32> -> vector<32x16xf32>
    %c0_21 = arith.constant 0 : index
    %c0_22 = arith.constant 0 : index
    %43 = vector.load %arg8[%c0_21, %c0_22] : memref<1x16xf32, #tpu.memory_space<vmem>>, vector<1x16xf32>
    %44 = vector.broadcast %43 : vector<1x16xf32> to vector<32x16xf32>
    %45 = arith.mulf %42, %44 : vector<32x16xf32>
    %c0_23 = arith.constant 0 : index
    %c0_24 = arith.constant 0 : index
    %46 = vector.load %arg9[%c0_23, %c0_24] : memref<1x16xf32, #tpu.memory_space<vmem>>, vector<1x16xf32>
    %47 = vector.broadcast %46 : vector<1x16xf32> to vector<32x16xf32>
    %48 = arith.addf %45, %47 : vector<32x16xf32>
    %cst_25 = arith.constant 0.000000e+00 : f32
    %49 = vector.broadcast %cst_25 : f32 to vector<32x16xf32>
    %50 = arith.maximumf %48, %49 : vector<32x16xf32>
    %51 = arith.truncf %50 : vector<32x16xf32> to vector<32x16xbf16>
    %c0_26 = arith.constant 0 : index
    %c0_27 = arith.constant 0 : index
    %52 = vector.load %arg6[%c0_26, %c0_27] : memref<16x16xbf16, #tpu.memory_space<vmem>>, vector<16x16xbf16>
    %cst_28 = arith.constant dense<0.000000e+00> : vector<32x16xf32>
    %53 = tpu.matmul %51, %52, %cst_28 {dimension_numbers = #tpu.dot_dimension_numbers<[1], [0], [0], [1], [0, 0, 1, 1], [], []>} : vector<32x16xbf16>, vector<16x16xbf16>, vector<32x16xf32> -> vector<32x16xf32>
    %c0_29 = arith.constant 0 : index
    %c0_30 = arith.constant 0 : index
    %54 = vector.load %arg7[%c0_29, %c0_30] : memref<1x16xf32, #tpu.memory_space<vmem>>, vector<1x16xf32>
    %55 = vector.broadcast %54 : vector<1x16xf32> to vector<32x16xf32>
    %56 = arith.addf %53, %55 : vector<32x16xf32>
    %57 = arith.addf %42, %56 : vector<32x16xf32>
    %58 = vector.extract_strided_slice %57 {offsets = [0, 0], sizes = [16, 16], strides = [1, 1]} : vector<32x16xf32> to vector<16x16xf32>
    %cst_31 = arith.constant dense<0.000000e+00> : vector<16xf32>
    %59 = vector.multi_reduction <add>, %58, %cst_31 [1] : vector<16x16xf32> to vector<16xf32>
    %60 = vector.shape_cast %59 : vector<16xf32> to vector<16x1xf32>
    %cst_32 = arith.constant 1.600000e+01 : f32
    %61 = vector.broadcast %cst_32 : f32 to vector<16x1xf32>
    %62 = arith.divf %60, %61 : vector<16x1xf32>
    %63 = vector.broadcast %62 : vector<16x1xf32> to vector<16x16xf32>
    %64 = arith.subf %58, %63 : vector<16x16xf32>
    %65 = arith.mulf %64, %64 : vector<16x16xf32>
    %cst_33 = arith.constant dense<0.000000e+00> : vector<16xf32>
    %66 = vector.multi_reduction <add>, %65, %cst_33 [1] : vector<16x16xf32> to vector<16xf32>
    %67 = vector.shape_cast %66 : vector<16xf32> to vector<16x1xf32>
    %cst_34 = arith.constant 1.600000e+01 : f32
    %68 = vector.broadcast %cst_34 : f32 to vector<16x1xf32>
    %69 = arith.divf %67, %68 : vector<16x1xf32>
    %cst_35 = arith.constant 1.000000e-03 : f32
    %70 = vector.broadcast %cst_35 : f32 to vector<16x1xf32>
    %71 = arith.addf %69, %70 : vector<16x1xf32>
    %72 = math.rsqrt %71 : vector<16x1xf32>
    %73 = vector.broadcast %72 : vector<16x1xf32> to vector<16x16xf32>
    %74 = arith.mulf %64, %73 : vector<16x16xf32>
    %c0_36 = arith.constant 0 : index
    %c0_37 = arith.constant 0 : index
    %75 = vector.load %arg10[%c0_36, %c0_37] : memref<16x1xf32, #tpu.memory_space<vmem>>, vector<16x1xf32>
    %76 = vector.broadcast %75 : vector<16x1xf32> to vector<16x16xf32>
    %77 = arith.mulf %74, %76 : vector<16x16xf32>
    %c0_38 = arith.constant 0 : index
    %c0_39 = arith.constant 0 : index
    %78 = vector.load %arg11[%c0_38, %c0_39] : memref<16x1xf32, #tpu.memory_space<vmem>>, vector<16x1xf32>
    %79 = vector.broadcast %78 : vector<16x1xf32> to vector<16x16xf32>
    %80 = arith.addf %77, %79 : vector<16x16xf32>
    %cst_40 = arith.constant 0.000000e+00 : f32
    %81 = vector.broadcast %cst_40 : f32 to vector<16x16xf32>
    %82 = arith.maximumf %80, %81 : vector<16x16xf32>
    %83 = arith.truncf %82 : vector<16x16xf32> to vector<16x16xbf16>
    %c0_41 = arith.constant 0 : index
    %c0_42 = arith.constant 0 : index
    %84 = vector.load %arg12[%c0_41, %c0_42] : memref<16x16xbf16, #tpu.memory_space<vmem>>, vector<16x16xbf16>
    %cst_43 = arith.constant dense<0.000000e+00> : vector<16x16xf32>
    %85 = tpu.matmul %84, %83, %cst_43 {dimension_numbers = #tpu.dot_dimension_numbers<[1], [0], [0], [1], [0, 0, 1, 1], [], []>} : vector<16x16xbf16>, vector<16x16xbf16>, vector<16x16xf32> -> vector<16x16xf32>
    %c0_44 = arith.constant 0 : index
    %c0_45 = arith.constant 0 : index
    %86 = vector.load %arg13[%c0_44, %c0_45] : memref<16x1xf32, #tpu.memory_space<vmem>>, vector<16x1xf32>
    %87 = vector.broadcast %86 : vector<16x1xf32> to vector<16x16xf32>
    %88 = arith.addf %85, %87 : vector<16x16xf32>
    %c0_46 = arith.constant 0 : index
    %c0_47 = arith.constant 0 : index
    %89 = vector.load %arg14[%c0_46, %c0_47] : memref<16x8xbf16, #tpu.memory_space<vmem>>, vector<16x8xbf16>
    %90 = vector.extract_strided_slice %0 {offsets = [0, 0, 0], sizes = [1, 8, 16], strides = [1, 1, 1]} : vector<2x8x16xf32> to vector<1x8x16xf32>
    %91 = vector.shape_cast %90 : vector<1x8x16xf32> to vector<8x16xf32>
    %92 = arith.truncf %91 : vector<8x16xf32> to vector<8x16xbf16>
    %cst_48 = arith.constant dense<0.000000e+00> : vector<16x16xf32>
    %93 = tpu.matmul %89, %92, %cst_48 {dimension_numbers = #tpu.dot_dimension_numbers<[1], [0], [0], [1], [0, 0, 1, 1], [], []>} : vector<16x8xbf16>, vector<8x16xbf16>, vector<16x16xf32> -> vector<16x16xf32>
    %94 = arith.addf %88, %93 : vector<16x16xf32>
    %c0_49 = arith.constant 0 : index
    %c0_50 = arith.constant 0 : index
    %c0_51 = arith.constant 0 : index
    %95 = vector.load %arg15[%c0_49, %c0_50, %c0_51] : memref<2x16x16xf32, #tpu.memory_space<vmem>>, vector<1x16x16xf32>
    %96 = vector.shape_cast %95 : vector<1x16x16xf32> to vector<16x16xf32>
    %97 = vector.shape_cast %94 : vector<16x16xf32> to vector<1x16x16xf32>
    tpu.vector_store %arg15[%c0_49, %c0_50, %c0_51], %97 {strides = array<i32>} : memref<2x16x16xf32, #tpu.memory_space<vmem>>, vector<1x16x16xf32>,
    %98 = vector.extract_strided_slice %57 {offsets = [16, 0], sizes = [16, 16], strides = [1, 1]} : vector<32x16xf32> to vector<16x16xf32>
    %cst_52 = arith.constant dense<0.000000e+00> : vector<16xf32>
    %99 = vector.multi_reduction <add>, %98, %cst_52 [1] : vector<16x16xf32> to vector<16xf32>
    %100 = vector.shape_cast %99 : vector<16xf32> to vector<16x1xf32>
    %cst_53 = arith.constant 1.600000e+01 : f32
    %101 = vector.broadcast %cst_53 : f32 to vector<16x1xf32>
    %102 = arith.divf %100, %101 : vector<16x1xf32>
    %103 = vector.broadcast %102 : vector<16x1xf32> to vector<16x16xf32>
    %104 = arith.subf %98, %103 : vector<16x16xf32>
    %105 = arith.mulf %104, %104 : vector<16x16xf32>
    %cst_54 = arith.constant dense<0.000000e+00> : vector<16xf32>
    %106 = vector.multi_reduction <add>, %105, %cst_54 [1] : vector<16x16xf32> to vector<16xf32>
    %107 = vector.shape_cast %106 : vector<16xf32> to vector<16x1xf32>
    %cst_55 = arith.constant 1.600000e+01 : f32
    %108 = vector.broadcast %cst_55 : f32 to vector<16x1xf32>
    %109 = arith.divf %107, %108 : vector<16x1xf32>
    %cst_56 = arith.constant 1.000000e-03 : f32
    %110 = vector.broadcast %cst_56 : f32 to vector<16x1xf32>
    %111 = arith.addf %109, %110 : vector<16x1xf32>
    %112 = math.rsqrt %111 : vector<16x1xf32>
    %113 = vector.broadcast %112 : vector<16x1xf32> to vector<16x16xf32>
    %114 = arith.mulf %104, %113 : vector<16x16xf32>
    %c0_57 = arith.constant 0 : index
    %c0_58 = arith.constant 0 : index
    %115 = vector.load %arg10[%c0_57, %c0_58] : memref<16x1xf32, #tpu.memory_space<vmem>>, vector<16x1xf32>
    %116 = vector.broadcast %115 : vector<16x1xf32> to vector<16x16xf32>
    %117 = arith.mulf %114, %116 : vector<16x16xf32>
    %c0_59 = arith.constant 0 : index
    %c0_60 = arith.constant 0 : index
    %118 = vector.load %arg11[%c0_59, %c0_60] : memref<16x1xf32, #tpu.memory_space<vmem>>, vector<16x1xf32>
    %119 = vector.broadcast %118 : vector<16x1xf32> to vector<16x16xf32>
    %120 = arith.addf %117, %119 : vector<16x16xf32>
    %cst_61 = arith.constant 0.000000e+00 : f32
    %121 = vector.broadcast %cst_61 : f32 to vector<16x16xf32>
    %122 = arith.maximumf %120, %121 : vector<16x16xf32>
    %123 = arith.truncf %122 : vector<16x16xf32> to vector<16x16xbf16>
    %c0_62 = arith.constant 0 : index
    %c0_63 = arith.constant 0 : index
    %124 = vector.load %arg12[%c0_62, %c0_63] : memref<16x16xbf16, #tpu.memory_space<vmem>>, vector<16x16xbf16>
    %cst_64 = arith.constant dense<0.000000e+00> : vector<16x16xf32>
    %125 = tpu.matmul %124, %123, %cst_64 {dimension_numbers = #tpu.dot_dimension_numbers<[1], [0], [0], [1], [0, 0, 1, 1], [], []>} : vector<16x16xbf16>, vector<16x16xbf16>, vector<16x16xf32> -> vector<16x16xf32>
    %c0_65 = arith.constant 0 : index
    %c0_66 = arith.constant 0 : index
    %126 = vector.load %arg13[%c0_65, %c0_66] : memref<16x1xf32, #tpu.memory_space<vmem>>, vector<16x1xf32>
    %127 = vector.broadcast %126 : vector<16x1xf32> to vector<16x16xf32>
    %128 = arith.addf %125, %127 : vector<16x16xf32>
    %c0_67 = arith.constant 0 : index
    %c0_68 = arith.constant 0 : index
    %129 = vector.load %arg14[%c0_67, %c0_68] : memref<16x8xbf16, #tpu.memory_space<vmem>>, vector<16x8xbf16>
    %130 = vector.extract_strided_slice %0 {offsets = [1, 0, 0], sizes = [1, 8, 16], strides = [1, 1, 1]} : vector<2x8x16xf32> to vector<1x8x16xf32>
    %131 = vector.shape_cast %130 : vector<1x8x16xf32> to vector<8x16xf32>
    %132 = arith.truncf %131 : vector<8x16xf32> to vector<8x16xbf16>
    %cst_69 = arith.constant dense<0.000000e+00> : vector<16x16xf32>
    %133 = tpu.matmul %129, %132, %cst_69 {dimension_numbers = #tpu.dot_dimension_numbers<[1], [0], [0], [1], [0, 0, 1, 1], [], []>} : vector<16x8xbf16>, vector<8x16xbf16>, vector<16x16xf32> -> vector<16x16xf32>
    %134 = arith.addf %128, %133 : vector<16x16xf32>
    %c1 = arith.constant 1 : index
    %c0_70 = arith.constant 0 : index
    %c0_71 = arith.constant 0 : index
    %135 = vector.load %arg15[%c1, %c0_70, %c0_71] : memref<2x16x16xf32, #tpu.memory_space<vmem>>, vector<1x16x16xf32>
    %136 = vector.shape_cast %135 : vector<1x16x16xf32> to vector<16x16xf32>
    %137 = vector.shape_cast %134 : vector<16x16xf32> to vector<1x16x16xf32>
    tpu.vector_store %arg15[%c1, %c0_70, %c0_71], %137 {strides = array<i32>} : memref<2x16x16xf32, #tpu.memory_space<vmem>>, vector<1x16x16xf32>,
    return
  }
  func.func @transform_0(%arg0: i32) -> (i32, i32, i32) {
    %c0_i32 = arith.constant 0 : i32
    %c0_i32_0 = arith.constant 0 : i32
    %c0_i32_1 = arith.constant 0 : i32
    return %arg0, %c0_i32, %c0_i32_0 : i32, i32, i32
  }
  func.func @transform_1(%arg0: i32) -> (i32, i32) {
    %c0_i32 = arith.constant 0 : i32
    %c0_i32_0 = arith.constant 0 : i32
    %c0_i32_1 = arith.constant 0 : i32
    return %c0_i32, %c0_i32_0 : i32, i32
  }
  func.func @transform_2(%arg0: i32) -> (i32, i32) {
    %c0_i32 = arith.constant 0 : i32
    %c0_i32_0 = arith.constant 0 : i32
    %c0_i32_1 = arith.constant 0 : i32
    return %c0_i32, %c0_i32_0 : i32, i32
  }
  func.func @transform_3(%arg0: i32) -> (i32, i32) {
    %c0_i32 = arith.constant 0 : i32
    %c0_i32_0 = arith.constant 0 : i32
    %c0_i32_1 = arith.constant 0 : i32
    return %c0_i32, %c0_i32_0 : i32, i32
  }
  func.func @transform_4(%arg0: i32) -> (i32, i32) {
    %c0_i32 = arith.constant 0 : i32
    %c0_i32_0 = arith.constant 0 : i32
    %c0_i32_1 = arith.constant 0 : i32
    return %c0_i32, %c0_i32_0 : i32, i32
  }
  func.func @transform_5(%arg0: i32) -> (i32, i32) {
    %c0_i32 = arith.constant 0 : i32
    %c0_i32_0 = arith.constant 0 : i32
    %c0_i32_1 = arith.constant 0 : i32
    return %c0_i32, %c0_i32_0 : i32, i32
  }
  func.func @transform_6(%arg0: i32) -> (i32, i32) {
    %c0_i32 = arith.constant 0 : i32
    %c0_i32_0 = arith.constant 0 : i32
    %c0_i32_1 = arith.constant 0 : i32
    return %c0_i32, %c0_i32_0 : i32, i32
  }
  func.func @transform_7(%arg0: i32) -> (i32, i32) {
    %c0_i32 = arith.constant 0 : i32
    %c0_i32_0 = arith.constant 0 : i32
    %c0_i32_1 = arith.constant 0 : i32
    return %c0_i32, %c0_i32_0 : i32, i32
  }
  func.func @transform_8(%arg0: i32) -> (i32, i32) {
    %c0_i32 = arith.constant 0 : i32
    %c0_i32_0 = arith.constant 0 : i32
    %c0_i32_1 = arith.constant 0 : i32
    return %c0_i32, %c0_i32_0 : i32, i32
  }
  func.func @transform_9(%arg0: i32) -> (i32, i32) {
    %c0_i32 = arith.constant 0 : i32
    %c0_i32_0 = arith.constant 0 : i32
    %c0_i32_1 = arith.constant 0 : i32
    return %c0_i32, %c0_i32_0 : i32, i32
  }
  func.func @transform_10(%arg0: i32) -> (i32, i32) {
    %c0_i32 = arith.constant 0 : i32
    %c0_i32_0 = arith.constant 0 : i32
    %c0_i32_1 = arith.constant 0 : i32
    return %c0_i32, %c0_i32_0 : i32, i32
  }
  func.func @transform_11(%arg0: i32) -> (i32, i32) {
    %c0_i32 = arith.constant 0 : i32
    %c0_i32_0 = arith.constant 0 : i32
    %c0_i32_1 = arith.constant 0 : i32
    return %c0_i32, %c0_i32_0 : i32, i32
  }
  func.func @transform_12(%arg0: i32) -> (i32, i32) {
    %c0_i32 = arith.constant 0 : i32
    %c0_i32_0 = arith.constant 0 : i32
    %c0_i32_1 = arith.constant 0 : i32
    return %c0_i32, %c0_i32_0 : i32, i32
  }
  func.func @transform_13(%arg0: i32) -> (i32, i32) {
    %c0_i32 = arith.constant 0 : i32
    %c0_i32_0 = arith.constant 0 : i32
    %c0_i32_1 = arith.constant 0 : i32
    return %c0_i32, %c0_i32_0 : i32, i32
  }
  func.func @transform_14(%arg0: i32) -> (i32, i32, i32) {
    %c0_i32 = arith.constant 0 : i32
    %c0_i32_0 = arith.constant 0 : i32
    %c0_i32_1 = arith.constant 0 : i32
    return %arg0, %c0_i32, %c0_i32_0 : i32, i32, i32
  }
}

</mosaic_0001>

<llo_original>
// kernel: tpu_custom_call.1
$region0: #{tpu_custom_call.1}
  #allocation0 [shape = 'u32[]', space=smem, size = 0x4, offset = 0x4, fixed_abs, tag = 'smem constant byte address 0x4 - core index']
  #allocation1 [shape = 'u32[144,128]{1,0:T(1,128)}', space=vmem, size = 0x12000, scoped, tag = 'internal scratch']
  %s0 = inlined_call_operand.vmem [shape: f32[2,8,16], index: 0, kind: input, shape index: {}]
  %s1 = inlined_call_operand.vmem [shape: bf16[16,8], index: 1, kind: input, shape index: {}]
  %s2 = inlined_call_operand.vmem [shape: f32[16,1], index: 2, kind: input, shape index: {}]
  %s3 = inlined_call_operand.vmem [shape: f32[8,1], index: 3, kind: input, shape index: {}]
  %s4 = inlined_call_operand.vmem [shape: f32[8,1], index: 4, kind: input, shape index: {}]
  %s5 = inlined_call_operand.vmem [shape: bf16[16,16], index: 5, kind: input, shape index: {}]
  %s6 = inlined_call_operand.vmem [shape: f32[1,16], index: 6, kind: input, shape index: {}]
  %s7 = inlined_call_operand.vmem [shape: f32[1,16], index: 7, kind: input, shape index: {}]
  %s8 = inlined_call_operand.vmem [shape: f32[1,16], index: 8, kind: input, shape index: {}]
  %s9 = inlined_call_operand.vmem [shape: f32[16,1], index: 9, kind: input, shape index: {}]
  %s10 = inlined_call_operand.vmem [shape: f32[16,1], index: 10, kind: input, shape index: {}]
  %s11 = inlined_call_operand.vmem [shape: bf16[16,16], index: 11, kind: input, shape index: {}]
  %s12 = inlined_call_operand.vmem [shape: f32[16,1], index: 12, kind: input, shape index: {}]
  %s13 = inlined_call_operand.vmem [shape: bf16[16,8], index: 13, kind: input, shape index: {}]
  %s14 = inlined_call_operand.hbm [shape: f32[2,16,16], index: 14, kind: output, shape index: {}]
  %s15 = sld [smem:[#allocation0]]
  $region66: #{tpu_custom_call.1} parent=0
    _
  %s17 = ssub.s32 1, %s15
  %s18 = scalar_select 0, %s17, %s15
  $region1: #{tpu_custom_call.1} parent=0
    #allocation2 [shape = 'u8[16384]{0}', space=vmem, size = 0x4000, scoped, tag = 'output window, operand 0, single buffered']
    #allocation3 [shape = 's32[1]{0}', space=sflag, size = 0x4, scoped, tag = 'scoped memory for tpu_custom_call.1']
    %19 = vsyncpa [#allocation3], 0
    // Predicated region
    $region2: #{tpu_custom_call.1} parent=1 // pred_check
      _
    $region3: #{tpu_custom_call.1} parent=1 // pred_check_branch
      %21 = sbr.rel (0) target = $region5
    $region4: #{tpu_custom_call.1} parent=1 // pred_region
      _
    $region5: #{tpu_custom_call.1} parent=1 // pred_fallthru
      _
    // Predicated region
    $region6: #{tpu_custom_call.1} parent=1 // pred_check
      _
    $region7: #{tpu_custom_call.1} parent=1 // pred_check_branch
      %23 = sbr.rel (0) target = $region9
    $region8: #{tpu_custom_call.1} parent=1 // pred_region
      _
    $region9: #{tpu_custom_call.1} parent=1 // pred_fallthru
      _
    // Predicated region
    $region10: #{tpu_custom_call.1} parent=1 // pred_check
      _
    $region11: #{tpu_custom_call.1} parent=1 // pred_check_branch
      %25 = sbr.rel (0) target = $region13
    $region12: #{tpu_custom_call.1} parent=1 // pred_region
      _
    $region13: #{tpu_custom_call.1} parent=1 // pred_fallthru
      _
    // Predicated region
    $region14: #{tpu_custom_call.1} parent=1 // pred_check
      _
    $region15: #{tpu_custom_call.1} parent=1 // pred_check_branch
      %27 = sbr.rel (0) target = $region17
    $region16: #{tpu_custom_call.1} parent=1 // pred_region
      _
    $region17: #{tpu_custom_call.1} parent=1 // pred_fallthru
      _
    // Predicated region
    $region18: #{tpu_custom_call.1} parent=1 // pred_check
      _
    $region19: #{tpu_custom_call.1} parent=1 // pred_check_branch
      %29 = sbr.rel (0) target = $region21
    $region20: #{tpu_custom_call.1} parent=1 // pred_region
      _
    $region21: #{tpu_custom_call.1} parent=1 // pred_fallthru
      _
    // Predicated region
    $region22: #{tpu_custom_call.1} parent=1 // pred_check
      _
    $region23: #{tpu_custom_call.1} parent=1 // pred_check_branch
      %31 = sbr.rel (0) target = $region25
    $region24: #{tpu_custom_call.1} parent=1 // pred_region
      _
    $region25: #{tpu_custom_call.1} parent=1 // pred_fallthru
      _
    // Predicated region
    $region26: #{tpu_custom_call.1} parent=1 // pred_check
      _
    $region27: #{tpu_custom_call.1} parent=1 // pred_check_branch
      %33 = sbr.rel (0) target = $region29
    $region28: #{tpu_custom_call.1} parent=1 // pred_region
      _
    $region29: #{tpu_custom_call.1} parent=1 // pred_fallthru
      _
    // Predicated region
    $region30: #{tpu_custom_call.1} parent=1 // pred_check
      _
    $region31: #{tpu_custom_call.1} parent=1 // pred_check_branch
      %35 = sbr.rel (0) target = $region33
    $region32: #{tpu_custom_call.1} parent=1 // pred_region
      _
    $region33: #{tpu_custom_call.1} parent=1 // pred_fallthru
      _
    // Predicated region
    $region34: #{tpu_custom_call.1} parent=1 // pred_check
      _
    $region35: #{tpu_custom_call.1} parent=1 // pred_check_branch
      %37 = sbr.rel (0) target = $region37
    $region36: #{tpu_custom_call.1} parent=1 // pred_region
      _
    $region37: #{tpu_custom_call.1} parent=1 // pred_fallthru
      _
    // Predicated region
    $region38: #{tpu_custom_call.1} parent=1 // pred_check
      _
    $region39: #{tpu_custom_call.1} parent=1 // pred_check_branch
      %39 = sbr.rel (0) target = $region41
    $region40: #{tpu_custom_call.1} parent=1 // pred_region
      _
    $region41: #{tpu_custom_call.1} parent=1 // pred_fallthru
      _
    // Predicated region
    $region42: #{tpu_custom_call.1} parent=1 // pred_check
      _
    $region43: #{tpu_custom_call.1} parent=1 // pred_check_branch
      %41 = sbr.rel (0) target = $region45
    $region44: #{tpu_custom_call.1} parent=1 // pred_region
      _
    $region45: #{tpu_custom_call.1} parent=1 // pred_fallthru
      _
    // Predicated region
    $region46: #{tpu_custom_call.1} parent=1 // pred_check
      _
    $region47: #{tpu_custom_call.1} parent=1 // pred_check_branch
      %43 = sbr.rel (0) target = $region49
    $region48: #{tpu_custom_call.1} parent=1 // pred_region
      _
    $region49: #{tpu_custom_call.1} parent=1 // pred_fallthru
      _
    // Predicated region
    $region50: #{tpu_custom_call.1} parent=1 // pred_check
      _
    $region51: #{tpu_custom_call.1} parent=1 // pred_check_branch
      %45 = sbr.rel (0) target = $region53
    $region52: #{tpu_custom_call.1} parent=1 // pred_region
      _
    $region53: #{tpu_custom_call.1} parent=1 // pred_fallthru
      _
    // Predicated region
    $region54: #{tpu_custom_call.1} parent=1 // pred_check
      _
    $region55: #{tpu_custom_call.1} parent=1 // pred_check_branch
      %47 = sbr.rel (0) target = $region57
    $region56: #{tpu_custom_call.1} parent=1 // pred_region
      _
    $region57: #{tpu_custom_call.1} parent=1 // pred_fallthru
      _
    %v49 = vld [vmem:[%s0] sm:$0xff]
    %v50 = vld [vmem:[%s0 + $0x8] sm:$0xff]
    %vm51 = vcmask 130048
    %v52 = vsel %vm51, %v49, 0.0
    %53 = vadd.xlane.f32.xlu0 %v52
    %v54 = vpop.xlane.xlu0 %53
    %v55 = vsel %vm51, %v50, 0.0
    %56 = vadd.xlane.f32.xlu0 %v55
    %v57 = vpop.xlane.xlu0 %56
    %v58 = vrcp.pop 16.0
    %v59 = vmul.f32 %v54, %v58
    %v60 = vmul.f32 %v57, %v58
    %v61 = vsub.f32 %v49, %v59
    %v62 = vsub.f32 %v50, %v60
    %v63 = vmul.f32 %v61, %v61
    %v64 = vmul.f32 %v62, %v62
    %v65 = vsel %vm51, %v63, 0.0
    %66 = vadd.xlane.f32.xlu0 %v65
    %v67 = vpop.xlane.xlu0 %66
    %v68 = vsel %vm51, %v64, 0.0
    %69 = vadd.xlane.f32.xlu0 %v68
    %v70 = vpop.xlane.xlu0 %69
    %v71 = vmul.f32 %v67, %v58
    %v72 = vmul.f32 %v70, %v58
    %v73 = vadd.f32 %v71, 0.001
    %v74 = vadd.f32 %v72, 0.001
    %v75 = vrsqrt.pop %v73
    %v76 = vrsqrt.pop %v74
    %v77 = vmul.f32 %v61, %v75
    %v78 = vmul.f32 %v62, %v76
    %v79 = vld [vmem:[%s3] sm:$0xff]
    %81 = vset.pattern.permute.xlu0 0
    %82 = vperm.xlu0 %81, %v79
    %v83 = vpop.permute.xlu0 %82
    %v85 = vmul.f32 %v77, %v83
    %v86 = vmul.f32 %v78, %v83
    %v87 = vld [vmem:[%s4] sm:$0xff]
    %89 = vset.pattern.permute.xlu0 0
    %90 = vperm.xlu0 %89, %v87
    %v91 = vpop.permute.xlu0 %90
    %v93 = vadd.f32 %v85, %v91
    %v94 = vadd.f32 %v86, %v91
    %v95 = vmax.f32 %v93, 0.0
    %v96 = vmax.f32 %v94, 0.0
    %v97 = vpack.c.bf16 %v95, %v95
    %v98 = vpack.c.bf16 %v96, %v96
    %v99 = vld [vmem:[%s1] sm:$0xf]
    %v100 = vld [vmem:[%s1 + $0x4] sm:$0xf]
    %v101 = vld [vmem:[%s2] sm:$0xff]
    %v102 = vld [vmem:[%s2 + $0x8] sm:$0xff]
    %104 = vset.pattern.permute.xlu0 0
    %105 = vperm.xlu0 %104, %v101
    %v106 = vpop.permute.xlu0 %105
    %109 = vset.pattern.permute.xlu0 0
    %110 = vperm.xlu0 %109, %v102
    %v111 = vpop.permute.xlu0 %110
    %v115 = vunpack.c.l.b16 %v99
    %v116 = vunpack.c.l.b16 %v100
    %v117 = vpack.c.b16 %v116, %v115
    %vm118 = vcmask 64512
    %v120 = vsel %vm118, %v117, 0
    %vm122 = vcmask 1043456
    %v124 = vsel %vm122, %v97, 0
    %126 = vmatprep.subr.bf16.mxu0 0
    %127 = vmatpush1.bf16.msra.mxu0 0
    %128 = vmatprep.subr.bf16.mxu0 0
    %129 = vmatpush1.bf16.msra.mxu0 0
    %130 = vmatprep.subr.bf16.mxu0 0
    %131 = vmatpush1.bf16.msra.mxu0 0
    %132 = vmatprep.subr.bf16.mxu0 0
    %133 = vmatpush1.bf16.msra.mxu0 0
    %134 = vmatprep.subr.bf16.mxu0 0
    %135 = vmatpush1.bf16.msra.mxu0 0
    %136 = vmatprep.subr.bf16.mxu0 0
    %137 = vmatpush1.bf16.msra.mxu0 0
    %138 = vmatprep.subr.bf16.mxu0 0
    %139 = vmatpush1.bf16.msra.mxu0 0
    %140 = vmatprep.subr.bf16.mxu0 0
    %141 = vmatpush1.bf16.msra.mxu0 %v124
    %142 = vmatprep.subr.bf16.mxu0 0
    %143 = vmatpush2.bf16.msra.mxu0 0
    %144 = vmatprep.subr.bf16.mxu0 0
    %145 = vmatpush2.bf16.msra.mxu0 0
    %146 = vmatprep.subr.bf16.mxu0 0
    %147 = vmatpush2.bf16.msra.mxu0 0
    %148 = vmatprep.subr.bf16.mxu0 0
    %149 = vmatpush2.bf16.msra.mxu0 0
    %150 = vmatprep.subr.bf16.mxu0 0
    %151 = vmatpush2.bf16.msra.mxu0 0
    %152 = vmatprep.subr.bf16.mxu0 0
    %153 = vmatpush2.bf16.msra.mxu0 0
    %154 = vmatprep.subr.bf16.mxu0 0
    %155 = vmatpush2.bf16.msra.mxu0 0
    %156 = vmatprep.subr.bf16.mxu0 0
    %157 = vmatpush2.bf16.msra.mxu0 0
    %158 = vmatprep.mubr.bf16.mxu0 0
    %159 = vmatmul.mubr.bf16.gmra.mxu0 %v120
    %v160 = vpop.f32.mrf.mxu0
    %v161 = vadd.f32 %v106, %v160
    %v162 = vpop.f32.mrf.mxu0
    %v163 = vpop.f32.mrf.mxu0
    %v164 = vadd.f32 %v111, %v163
    %v165 = vpop.f32.mrf.mxu0
    %166 = vdwg.mxu0
    %v168 = vsel %vm122, %v98, 0
    %170 = vmatprep.subr.bf16.mxu0 0
    %171 = vmatpush1.bf16.msra.mxu0 0
    %172 = vmatprep.subr.bf16.mxu0 0
    %173 = vmatpush1.bf16.msra.mxu0 0
    %174 = vmatprep.subr.bf16.mxu0 0
    %175 = vmatpush1.bf16.msra.mxu0 0
    %176 = vmatprep.subr.bf16.mxu0 0
    %177 = vmatpush1.bf16.msra.mxu0 0
    %178 = vmatprep.subr.bf16.mxu0 0
    %179 = vmatpush1.bf16.msra.mxu0 0
    %180 = vmatprep.subr.bf16.mxu0 0
    %181 = vmatpush1.bf16.msra.mxu0 0
    %182 = vmatprep.subr.bf16.mxu0 0
    %183 = vmatpush1.bf16.msra.mxu0 0
    %184 = vmatprep.subr.bf16.mxu0 0
    %185 = vmatpush1.bf16.msra.mxu0 %v168
    %186 = vmatprep.subr.bf16.mxu0 0
    %187 = vmatpush2.bf16.msra.mxu0 0
    %188 = vmatprep.subr.bf16.mxu0 0
    %189 = vmatpush2.bf16.msra.mxu0 0
    %190 = vmatprep.subr.bf16.mxu0 0
    %191 = vmatpush2.bf16.msra.mxu0 0
    %192 = vmatprep.subr.bf16.mxu0 0
    %193 = vmatpush2.bf16.msra.mxu0 0
    %194 = vmatprep.subr.bf16.mxu0 0
    %195 = vmatpush2.bf16.msra.mxu0 0
    %196 = vmatprep.subr.bf16.mxu0 0
    %197 = vmatpush2.bf16.msra.mxu0 0
    %198 = vmatprep.subr.bf16.mxu0 0
    %199 = vmatpush2.bf16.msra.mxu0 0
    %200 = vmatprep.subr.bf16.mxu0 0
    %201 = vmatpush2.bf16.msra.mxu0 0
    %202 = vmatprep.mubr.bf16.mxu0 0
    %203 = vmatmul.mubr.bf16.gmra.mxu0 %v120
    %v204 = vpop.f32.mrf.mxu0
    %v205 = vadd.f32 %v106, %v204
    %v206 = vpop.f32.mrf.mxu0
    %v207 = vpop.f32.mrf.mxu0
    %v208 = vadd.f32 %v111, %v207
    %v209 = vpop.f32.mrf.mxu0
    %210 = vdwg.mxu0
    %v211 = vld [vmem:[%s7] sm:$0x1]
    %v213 = vlaneseq
    %v214 = vshrl.u32 %v213, 7
    %v215 = vsub.s32 0, %v214
    %v216 = vrot.slane %v211, %v215
    %v218 = vmul.f32 %v161, %v216
    %v219 = vmul.f32 %v164, %v216
    %v220 = vmul.f32 %v205, %v216
    %v221 = vmul.f32 %v208, %v216
    %v222 = vld [vmem:[%s8] sm:$0x1]
    %v224 = vlaneseq
    %v225 = vshrl.u32 %v224, 7
    %v226 = vsub.s32 0, %v225
    %v227 = vrot.slane %v222, %v226
    %v229 = vadd.f32 %v218, %v227
    %v230 = vadd.f32 %v219, %v227
    %v231 = vadd.f32 %v220, %v227
    %v232 = vadd.f32 %v221, %v227
    %v233 = vmax.f32 %v229, 0.0
    %v234 = vmax.f32 %v230, 0.0
    %v235 = vmax.f32 %v231, 0.0
    %v236 = vmax.f32 %v232, 0.0
    %v237 = vpack.c.bf16 %v234, %v233
    %v238 = vpack.c.bf16 %v236, %v235
    %v239 = vld [vmem:[%s5] sm:$0xf]
    %v240 = vld [vmem:[%s5 + $0x4] sm:$0xf]
    %v241 = vld [vmem:[%s6] sm:$0x1]
    %v243 = vlaneseq
    %v244 = vshrl.u32 %v243, 7
    %v245 = vsub.s32 0, %v244
    %v246 = vrot.slane %v241, %v245
    %v250 = vunpack.c.l.b16 %v239
    %v251 = vunpack.c.l.b16 %v240
    %v252 = vpack.c.b16 %v251, %v250
    %v255 = vsel %vm51, %v237, 0
    %v258 = vsel %vm51, %v238, 0
    %260 = vmatprep.subr.bf16.mxu0 0
    %261 = vmatpush1.bf16.msra.mxu0 0
    %262 = vmatprep.subr.bf16.mxu0 0
    %263 = vmatpush1.bf16.msra.mxu0 0
    %264 = vmatprep.subr.bf16.mxu0 0
    %265 = vmatpush1.bf16.msra.mxu0 0
    %266 = vmatprep.subr.bf16.mxu0 0
    %267 = vmatpush1.bf16.msra.mxu0 0
    %268 = vmatprep.subr.bf16.mxu0 0
    %269 = vmatpush1.bf16.msra.mxu0 0
    %270 = vmatprep.subr.bf16.mxu0 0
    %271 = vmatpush1.bf16.msra.mxu0 0
    %272 = vmatprep.subr.bf16.mxu0 0
    %273 = vmatpush1.bf16.msra.mxu0 0
    %274 = vmatprep.subr.bf16.mxu0 0
    %275 = vmatpush1.bf16.msra.mxu0 %v252
    %276 = vmatprep.subr.bf16.mxu0 0
    %277 = vmatpush2.bf16.msra.mxu0 0
    %278 = vmatprep.subr.bf16.mxu0 0
    %279 = vmatpush2.bf16.msra.mxu0 0
    %280 = vmatprep.subr.bf16.mxu0 0
    %281 = vmatpush2.bf16.msra.mxu0 0
    %282 = vmatprep.subr.bf16.mxu0 0
    %283 = vmatpush2.bf16.msra.mxu0 0
    %284 = vmatprep.subr.bf16.mxu0 0
    %285 = vmatpush2.bf16.msra.mxu0 0
    %286 = vmatprep.subr.bf16.mxu0 0
    %287 = vmatpush2.bf16.msra.mxu0 0
    %288 = vmatprep.subr.bf16.mxu0 0
    %289 = vmatpush2.bf16.msra.mxu0 0
    %290 = vmatprep.subr.bf16.mxu0 0
    %291 = vmatpush2.bf16.msra.mxu0 0
    %292 = vmatprep.mubr.bf16.mxu0 0
    %293 = vmatmul.mubr.bf16.gmra.mxu0 %v255
    %v294 = vpop.f32.mrf.mxu0
    %v295 = vadd.f32 %v246, %v294
    %v296 = vpop.f32.mrf.mxu0
    %v297 = vpop.f32.mrf.mxu0
    %v298 = vadd.f32 %v246, %v297
    %v299 = vpop.f32.mrf.mxu0
    %300 = vmatprep.mubr.bf16.mxu0 0
    %301 = vmatmul.mubr.bf16.gmra.mxu0 %v258
    %v302 = vpop.f32.mrf.mxu0
    %v303 = vadd.f32 %v246, %v302
    %v304 = vpop.f32.mrf.mxu0
    %v305 = vpop.f32.mrf.mxu0
    %v306 = vadd.f32 %v246, %v305
    %v307 = vpop.f32.mrf.mxu0
    %308 = vdwg.mxu0
    %v309 = vadd.f32 %v161, %v295
    %v310 = vadd.f32 %v164, %v298
    %v311 = vadd.f32 %v205, %v303
    %v312 = vadd.f32 %v208, %v306
    %v313 = vsel %vm51, %v309, 0.0
    %314 = vadd.xlane.f32.xlu0 %v313
    %v315 = vpop.xlane.xlu0 %314
    %v316 = vsel %vm51, %v310, 0.0
    %317 = vadd.xlane.f32.xlu0 %v316
    %v318 = vpop.xlane.xlu0 %317
    %v319 = vmul.f32 %v315, %v58
    %v320 = vmul.f32 %v318, %v58
    %v321 = vsub.f32 %v309, %v319
    %v322 = vsub.f32 %v310, %v320
    %v323 = vmul.f32 %v321, %v321
    %v324 = vmul.f32 %v322, %v322
    %v325 = vsel %vm51, %v323, 0.0
    %326 = vadd.xlane.f32.xlu0 %v325
    %v327 = vpop.xlane.xlu0 %326
    %v328 = vsel %vm51, %v324, 0.0
    %329 = vadd.xlane.f32.xlu0 %v328
    %v330 = vpop.xlane.xlu0 %329
    %v331 = vmul.f32 %v327, %v58
    %v332 = vmul.f32 %v330, %v58
    %v333 = vadd.f32 %v331, 0.001
    %v334 = vadd.f32 %v332, 0.001
    %v335 = vrsqrt.pop %v333
    %v336 = vrsqrt.pop %v334
    %v337 = vmul.f32 %v321, %v335
    %v338 = vmul.f32 %v322, %v336
    %v339 = vld [vmem:[%s9] sm:$0xff]
    %v340 = vld [vmem:[%s9 + $0x8] sm:$0xff]
    %342 = vset.pattern.permute.xlu0 0
    %343 = vperm.xlu0 %342, %v339
    %v344 = vpop.permute.xlu0 %343
    %347 = vset.pattern.permute.xlu0 0
    %348 = vperm.xlu0 %347, %v340
    %v349 = vpop.permute.xlu0 %348
    %v351 = vmul.f32 %v337, %v344
    %v352 = vmul.f32 %v338, %v349
    %v353 = vld [vmem:[%s10] sm:$0xff]
    %v354 = vld [vmem:[%s10 + $0x8] sm:$0xff]
    %356 = vset.pattern.permute.xlu0 0
    %357 = vperm.xlu0 %356, %v353
    %v358 = vpop.permute.xlu0 %357
    %361 = vset.pattern.permute.xlu0 0
    %362 = vperm.xlu0 %361, %v354
    %v363 = vpop.permute.xlu0 %362
    %v365 = vadd.f32 %v351, %v358
    %v366 = vadd.f32 %v352, %v363
    %v367 = vmax.f32 %v365, 0.0
    %v368 = vmax.f32 %v366, 0.0
    %v369 = vpack.c.bf16 %v368, %v367
    %v370 = vld [vmem:[%s11] sm:$0xf]
    %v371 = vld [vmem:[%s11 + $0x4] sm:$0xf]
    %v372 = vld [vmem:[%s12] sm:$0xff]
    %v373 = vld [vmem:[%s12 + $0x8] sm:$0xff]
    %375 = vset.pattern.permute.xlu0 0
    %376 = vperm.xlu0 %375, %v372
    %v377 = vpop.permute.xlu0 %376
    %380 = vset.pattern.permute.xlu0 0
    %381 = vperm.xlu0 %380, %v373
    %v382 = vpop.permute.xlu0 %381
    %v386 = vunpack.c.l.b16 %v370
    %v387 = vunpack.c.l.b16 %v371
    %v388 = vpack.c.b16 %v387, %v386
    %v390 = vsel %vm51, %v388, 0
    %392 = vmatprep.subr.bf16.mxu0 0
    %393 = vmatpush1.bf16.msra.mxu0 0
    %394 = vmatprep.subr.bf16.mxu0 0
    %395 = vmatpush1.bf16.msra.mxu0 0
    %396 = vmatprep.subr.bf16.mxu0 0
    %397 = vmatpush1.bf16.msra.mxu0 0
    %398 = vmatprep.subr.bf16.mxu0 0
    %399 = vmatpush1.bf16.msra.mxu0 0
    %400 = vmatprep.subr.bf16.mxu0 0
    %401 = vmatpush1.bf16.msra.mxu0 0
    %402 = vmatprep.subr.bf16.mxu0 0
    %403 = vmatpush1.bf16.msra.mxu0 0
    %404 = vmatprep.subr.bf16.mxu0 0
    %405 = vmatpush1.bf16.msra.mxu0 0
    %406 = vmatprep.subr.bf16.mxu0 0
    %407 = vmatpush1.bf16.msra.mxu0 %v369
    %408 = vmatprep.subr.bf16.mxu0 0
    %409 = vmatpush2.bf16.msra.mxu0 0
    %410 = vmatprep.subr.bf16.mxu0 0
    %411 = vmatpush2.bf16.msra.mxu0 0
    %412 = vmatprep.subr.bf16.mxu0 0
    %413 = vmatpush2.bf16.msra.mxu0 0
    %414 = vmatprep.subr.bf16.mxu0 0
    %415 = vmatpush2.bf16.msra.mxu0 0
    %416 = vmatprep.subr.bf16.mxu0 0
    %417 = vmatpush2.bf16.msra.mxu0 0
    %418 = vmatprep.subr.bf16.mxu0 0
    %419 = vmatpush2.bf16.msra.mxu0 0
    %420 = vmatprep.subr.bf16.mxu0 0
    %421 = vmatpush2.bf16.msra.mxu0 0
    %422 = vmatprep.subr.bf16.mxu0 0
    %423 = vmatpush2.bf16.msra.mxu0 0
    %424 = vmatprep.mubr.bf16.mxu0 0
    %425 = vmatmul.mubr.bf16.gmra.mxu0 %v390
    %v426 = vpop.f32.mrf.mxu0
    %v427 = vadd.f32 %v377, %v426
    %v428 = vpop.f32.mrf.mxu0
    %v429 = vpop.f32.mrf.mxu0
    %v430 = vadd.f32 %v382, %v429
    %v431 = vpop.f32.mrf.mxu0
    %432 = vdwg.mxu0
    %v433 = vld [vmem:[%s13] sm:$0xf]
    %v434 = vld [vmem:[%s13 + $0x4] sm:$0xf]
    %v435 = vpack.c.bf16 %v49, %v49
    %v438 = vunpack.c.l.b16 %v433
    %v439 = vunpack.c.l.b16 %v434
    %v440 = vpack.c.b16 %v439, %v438
    %v442 = vsel %vm118, %v440, 0
    %v445 = vsel %vm122, %v435, 0
    %447 = vmatprep.subr.bf16.mxu0 0
    %448 = vmatpush1.bf16.msra.mxu0 0
    %449 = vmatprep.subr.bf16.mxu0 0
    %450 = vmatpush1.bf16.msra.mxu0 0
    %451 = vmatprep.subr.bf16.mxu0 0
    %452 = vmatpush1.bf16.msra.mxu0 0
    %453 = vmatprep.subr.bf16.mxu0 0
    %454 = vmatpush1.bf16.msra.mxu0 0
    %455 = vmatprep.subr.bf16.mxu0 0
    %456 = vmatpush1.bf16.msra.mxu0 0
    %457 = vmatprep.subr.bf16.mxu0 0
    %458 = vmatpush1.bf16.msra.mxu0 0
    %459 = vmatprep.subr.bf16.mxu0 0
    %460 = vmatpush1.bf16.msra.mxu0 0
    %461 = vmatprep.subr.bf16.mxu0 0
    %462 = vmatpush1.bf16.msra.mxu0 %v445
    %463 = vmatprep.subr.bf16.mxu0 0
    %464 = vmatpush2.bf16.msra.mxu0 0
    %465 = vmatprep.subr.bf16.mxu0 0
    %466 = vmatpush2.bf16.msra.mxu0 0
    %467 = vmatprep.subr.bf16.mxu0 0
    %468 = vmatpush2.bf16.msra.mxu0 0
    %469 = vmatprep.subr.bf16.mxu0 0
    %470 = vmatpush2.bf16.msra.mxu0 0
    %471 = vmatprep.subr.bf16.mxu0 0
    %472 = vmatpush2.bf16.msra.mxu0 0
    %473 = vmatprep.subr.bf16.mxu0 0
    %474 = vmatpush2.bf16.msra.mxu0 0
    %475 = vmatprep.subr.bf16.mxu0 0
    %476 = vmatpush2.bf16.msra.mxu0 0
    %477 = vmatprep.subr.bf16.mxu0 0
    %478 = vmatpush2.bf16.msra.mxu0 0
    %479 = vmatprep.mubr.bf16.mxu0 0
    %480 = vmatmul.mubr.bf16.gmra.mxu0 %v442
    %v481 = vpop.f32.mrf.mxu0
    %v482 = vadd.f32 0.0, %v481
    %v483 = vpop.f32.mrf.mxu0
    %v484 = vpop.f32.mrf.mxu0
    %v485 = vadd.f32 0.0, %v484
    %v486 = vpop.f32.mrf.mxu0
    %487 = vdwg.mxu0
    %v488 = vadd.f32 %v427, %v482
    %v489 = vadd.f32 %v430, %v485
    %490 = vst.msk [vmem:[#allocation2] sm:$0xff] %vm51, %v488
    %491 = vst.msk [vmem:[#allocation2 + $0x8] sm:$0xff] %vm51, %v489
    %v492 = vsel %vm51, %v311, 0.0
    %493 = vadd.xlane.f32.xlu0 %v492
    %v494 = vpop.xlane.xlu0 %493
    %v495 = vsel %vm51, %v312, 0.0
    %496 = vadd.xlane.f32.xlu0 %v495
    %v497 = vpop.xlane.xlu0 %496
    %v498 = vmul.f32 %v494, %v58
    %v499 = vmul.f32 %v497, %v58
    %v500 = vsub.f32 %v311, %v498
    %v501 = vsub.f32 %v312, %v499
    %v502 = vmul.f32 %v500, %v500
    %v503 = vmul.f32 %v501, %v501
    %v504 = vsel %vm51, %v502, 0.0
    %505 = vadd.xlane.f32.xlu0 %v504
    %v506 = vpop.xlane.xlu0 %505
    %v507 = vsel %vm51, %v503, 0.0
    %508 = vadd.xlane.f32.xlu0 %v507
    %v509 = vpop.xlane.xlu0 %508
    %v510 = vmul.f32 %v506, %v58
    %v511 = vmul.f32 %v509, %v58
    %v512 = vadd.f32 %v510, 0.001
    %v513 = vadd.f32 %v511, 0.001
    %v514 = vrsqrt.pop %v512
    %v515 = vrsqrt.pop %v513
    %v516 = vmul.f32 %v500, %v514
    %v517 = vmul.f32 %v501, %v515
    %v518 = vld [vmem:[%s9] sm:$0xff]
    %v519 = vld [vmem:[%s9 + $0x8] sm:$0xff]
    %521 = vset.pattern.permute.xlu0 0
    %522 = vperm.xlu0 %521, %v518
    %v523 = vpop.permute.xlu0 %522
    %526 = vset.pattern.permute.xlu0 0
    %527 = vperm.xlu0 %526, %v519
    %v528 = vpop.permute.xlu0 %527
    %v530 = vmul.f32 %v516, %v523
    %v531 = vmul.f32 %v517, %v528
    %v532 = vld [vmem:[%s10] sm:$0xff]
    %v533 = vld [vmem:[%s10 + $0x8] sm:$0xff]
    %535 = vset.pattern.permute.xlu0 0
    %536 = vperm.xlu0 %535, %v532
    %v537 = vpop.permute.xlu0 %536
    %540 = vset.pattern.permute.xlu0 0
    %541 = vperm.xlu0 %540, %v533
    %v542 = vpop.permute.xlu0 %541
    %v544 = vadd.f32 %v530, %v537
    %v545 = vadd.f32 %v531, %v542
    %v546 = vmax.f32 %v544, 0.0
    %v547 = vmax.f32 %v545, 0.0
    %v548 = vpack.c.bf16 %v547, %v546
    %v549 = vld [vmem:[%s11] sm:$0xf]
    %v550 = vld [vmem:[%s11 + $0x4] sm:$0xf]
    %v551 = vld [vmem:[%s12] sm:$0xff]
    %v552 = vld [vmem:[%s12 + $0x8] sm:$0xff]
    %554 = vset.pattern.permute.xlu0 0
    %555 = vperm.xlu0 %554, %v551
    %v556 = vpop.permute.xlu0 %555
    %559 = vset.pattern.permute.xlu0 0
    %560 = vperm.xlu0 %559, %v552
    %v561 = vpop.permute.xlu0 %560
    %v565 = vunpack.c.l.b16 %v549
    %v566 = vunpack.c.l.b16 %v550
    %v567 = vpack.c.b16 %v566, %v565
    %v569 = vsel %vm51, %v567, 0
    %571 = vmatprep.subr.bf16.mxu0 0
    %572 = vmatpush1.bf16.msra.mxu0 0
    %573 = vmatprep.subr.bf16.mxu0 0
    %574 = vmatpush1.bf16.msra.mxu0 0
    %575 = vmatprep.subr.bf16.mxu0 0
    %576 = vmatpush1.bf16.msra.mxu0 0
    %577 = vmatprep.subr.bf16.mxu0 0
    %578 = vmatpush1.bf16.msra.mxu0 0
    %579 = vmatprep.subr.bf16.mxu0 0
    %580 = vmatpush1.bf16.msra.mxu0 0
    %581 = vmatprep.subr.bf16.mxu0 0
    %582 = vmatpush1.bf16.msra.mxu0 0
    %583 = vmatprep.subr.bf16.mxu0 0
    %584 = vmatpush1.bf16.msra.mxu0 0
    %585 = vmatprep.subr.bf16.mxu0 0
    %586 = vmatpush1.bf16.msra.mxu0 %v548
    %587 = vmatprep.subr.bf16.mxu0 0
    %588 = vmatpush2.bf16.msra.mxu0 0
    %589 = vmatprep.subr.bf16.mxu0 0
    %590 = vmatpush2.bf16.msra.mxu0 0
    %591 = vmatprep.subr.bf16.mxu0 0
    %592 = vmatpush2.bf16.msra.mxu0 0
    %593 = vmatprep.subr.bf16.mxu0 0
    %594 = vmatpush2.bf16.msra.mxu0 0
    %595 = vmatprep.subr.bf16.mxu0 0
    %596 = vmatpush2.bf16.msra.mxu0 0
    %597 = vmatprep.subr.bf16.mxu0 0
    %598 = vmatpush2.bf16.msra.mxu0 0
    %599 = vmatprep.subr.bf16.mxu0 0
    %600 = vmatpush2.bf16.msra.mxu0 0
    %601 = vmatprep.subr.bf16.mxu0 0
    %602 = vmatpush2.bf16.msra.mxu0 0
    %603 = vmatprep.mubr.bf16.mxu0 0
    %604 = vmatmul.mubr.bf16.gmra.mxu0 %v569
    %v605 = vpop.f32.mrf.mxu0
    %v606 = vadd.f32 %v556, %v605
    %v607 = vpop.f32.mrf.mxu0
    %v608 = vpop.f32.mrf.mxu0
    %v609 = vadd.f32 %v561, %v608
    %v610 = vpop.f32.mrf.mxu0
    %611 = vdwg.mxu0
    %v612 = vld [vmem:[%s13] sm:$0xf]
    %v613 = vld [vmem:[%s13 + $0x4] sm:$0xf]
    %v614 = vpack.c.bf16 %v50, %v50
    %v617 = vunpack.c.l.b16 %v612
    %v618 = vunpack.c.l.b16 %v613
    %v619 = vpack.c.b16 %v618, %v617
    %v621 = vsel %vm118, %v619, 0
    %v624 = vsel %vm122, %v614, 0
    %626 = vmatprep.subr.bf16.mxu0 0
    %627 = vmatpush1.bf16.msra.mxu0 0
    %628 = vmatprep.subr.bf16.mxu0 0
    %629 = vmatpush1.bf16.msra.mxu0 0
    %630 = vmatprep.subr.bf16.mxu0 0
    %631 = vmatpush1.bf16.msra.mxu0 0
    %632 = vmatprep.subr.bf16.mxu0 0
    %633 = vmatpush1.bf16.msra.mxu0 0
    %634 = vmatprep.subr.bf16.mxu0 0
    %635 = vmatpush1.bf16.msra.mxu0 0
    %636 = vmatprep.subr.bf16.mxu0 0
    %637 = vmatpush1.bf16.msra.mxu0 0
    %638 = vmatprep.subr.bf16.mxu0 0
    %639 = vmatpush1.bf16.msra.mxu0 0
    %640 = vmatprep.subr.bf16.mxu0 0
    %641 = vmatpush1.bf16.msra.mxu0 %v624
    %642 = vmatprep.subr.bf16.mxu0 0
    %643 = vmatpush2.bf16.msra.mxu0 0
    %644 = vmatprep.subr.bf16.mxu0 0
    %645 = vmatpush2.bf16.msra.mxu0 0
    %646 = vmatprep.subr.bf16.mxu0 0
    %647 = vmatpush2.bf16.msra.mxu0 0
    %648 = vmatprep.subr.bf16.mxu0 0
    %649 = vmatpush2.bf16.msra.mxu0 0
    %650 = vmatprep.subr.bf16.mxu0 0
    %651 = vmatpush2.bf16.msra.mxu0 0
    %652 = vmatprep.subr.bf16.mxu0 0
    %653 = vmatpush2.bf16.msra.mxu0 0
    %654 = vmatprep.subr.bf16.mxu0 0
    %655 = vmatpush2.bf16.msra.mxu0 0
    %656 = vmatprep.subr.bf16.mxu0 0
    %657 = vmatpush2.bf16.msra.mxu0 0
    %658 = vmatprep.mubr.bf16.mxu0 0
    %659 = vmatmul.mubr.bf16.gmra.mxu0 %v621
    %v660 = vpop.f32.mrf.mxu0
    %v661 = vadd.f32 0.0, %v660
    %v662 = vpop.f32.mrf.mxu0
    %v663 = vpop.f32.mrf.mxu0
    %v664 = vadd.f32 0.0, %v663
    %v665 = vpop.f32.mrf.mxu0
    %666 = vdwg.mxu0
    %v667 = vadd.f32 %v606, %v661
    %v668 = vadd.f32 %v609, %v664
    %s669 = scalar_lea.vmem [#allocation2], 16
    %670 = vst.msk [vmem:[%s669] sm:$0xff] %vm51, %v667
    %671 = vst.msk [vmem:[%s669 + $0x8] sm:$0xff] %vm51, %v668
    // Predicated region
    $region58: #{tpu_custom_call.1} parent=1 // pred_check
      _
    $region59: #{tpu_custom_call.1} parent=1 // pred_check_branch
      %673 = sbr.rel (0) target = $region61
    $region60: #{tpu_custom_call.1} parent=1 // pred_region
      %s675 = ssub.s32 512, 512
      %676 = vsyncadd [#allocation3], %s675
      %s677 = sshll.u32 [#allocation2], 4
      %s678 = int_to_ptr.vmem [resolvable:$true] %s677
      %683 = dma.vmem_to_hbm [thread:$0]  %s678, 512, %s14, [#allocation3], 128, 128, 8
    $region61: #{tpu_custom_call.1} parent=1 // pred_fallthru
      _
    // Predicated region
    $region62: #{tpu_custom_call.1} parent=1 // pred_check
      _
    $region63: #{tpu_custom_call.1} parent=1 // pred_check_branch
      %685 = sbr.rel (0) target = $region65
    $region64: #{tpu_custom_call.1} parent=1 // pred_region
      %686 = dma.done [#allocation3], 512
    $region65: #{tpu_custom_call.1} parent=1 // pred_fallthru
      _
    %687 = vsyncpa [#allocation3], 1

</llo_original>
